<compile_context>
chip_gen: v6e
topology: v6e:2x2x1
jax: 0.10.0
libtpu: 0.0.40
codegen_flags: <defaults>
</compile_context>

<pallas_src>
import jax
import jax.numpy as jnp
from jax.experimental import pallas as pl
from jax.experimental.pallas import tpu as pltpu

D_IN, D_H, D_OUT = 1, 50, 3
PAD = 128          # padded feature width (sublane axis in the transposed layout)
OUT_ROWS = 8       # output sublane rows written to HBM (rows 0..2 valid)
MAX_TM = 2048      # max batch tile along the lane axis


def _sirnet_kernel(x_ref, w_ref, wb_ref, o_ref):
    """Fused 4-layer MLP on one batch tile, batch-on-lanes layout.

    x_ref : (1, TM)        t values for this tile (lane-dense)
    w_ref : (3, PAD, PAD)  transposed, zero-padded W2^T, W3^T, W4^T (resident)
    wb_ref: (PAD, 8)       cols 0..3 = zero-padded biases b1..b4, col 4 = W1^T
    o_ref : (OUT_ROWS, TM) rows 0..2 valid, rows 3..7 exactly zero
    """
    x = x_ref[...]                                   # (1, TM)
    wb = wb_ref[...]                                 # (PAD, 8)

    # Layer 1: Linear(1, 50) + ReLU.  K == 1 -> outer product on the VPU.
    h = jnp.maximum(wb[:, 4:5] * x + wb[:, 0:1], 0.0)            # (PAD, TM)

    # Layers 2 & 3: Linear(50, 50) + ReLU on the MXU; activations stay (PAD, TM).
    h = jnp.maximum(
        jnp.dot(w_ref[0], h, preferred_element_type=jnp.float32) + wb[:, 1:2],
        0.0)
    h = jnp.maximum(
        jnp.dot(w_ref[1], h, preferred_element_type=jnp.float32) + wb[:, 2:3],
        0.0)

    # Layer 4: Linear(50, 3), no activation.
    h = jnp.dot(w_ref[2], h, preferred_element_type=jnp.float32) + wb[:, 3:4]

    # Lane-dense writeback: first 8 feature rows (3 valid + 5 zero padding).
    o_ref[...] = h[:OUT_ROWS, :].astype(o_ref.dtype)


def pack_params(params):
    """Transpose, zero-pad and stack the params once, outside the per-call path.

    Returns:
      w_stack : (3, PAD, PAD) f32 -- W2^T, W3^T, W4^T zero-padded.
      wb_stack: (PAD, 8)      f32 -- cols 0..3 = b1..b4 (zero-padded), col 4 = W1^T.
    """
    (w1, b1), (w2, b2), (w3, b3), (w4, b4) = params
    w_stack = jnp.zeros((3, PAD, PAD), jnp.float32)
    for k, w in enumerate((w2, w3, w4)):
        wt = jnp.asarray(w, jnp.float32).T               # (fan_out, fan_in)
        w_stack = w_stack.at[k, :wt.shape[0], :wt.shape[1]].set(wt)
    wb_stack = jnp.zeros((PAD, 8), jnp.float32)
    for k, b in enumerate((b1, b2, b3, b4)):
        b = jnp.asarray(b, jnp.float32)
        wb_stack = wb_stack.at[:b.shape[0], k].set(b)
    wb_stack = wb_stack.at[:D_H, 4].set(jnp.asarray(w1, jnp.float32)[0, :])
    return w_stack, wb_stack


def _round_up(x, m):
    return ((x + m - 1) // m) * m


def _choose_tile(n):
    """Pick (tm, n_pad) for the lane (batch) axis.

    * Lane blocks must be a multiple of 128 whenever the grid has > 1 step.
    * For n >= 16 we always emit >= 2 grid steps so both v7x TensorCores get
      work (padding cost is negligible at these sizes; no-op on v5e/v6e).
    * TM is capped at MAX_TM: per-step overhead (~0.35 us) dominates this tiny
      MLP, so big tiles amortize it while keeping VMEM use to a few MiB.
    """
    if n < 16:
        return n, n                               # single exact tile, no padding
    tm = min(MAX_TM, _round_up(-(-n // 2), 128))
    n_pad = _round_up(n, tm)
    if n_pad // tm < 2:
        n_pad = 2 * tm                            # force >= 2 steps (v7x megacore)
    return tm, n_pad


@jax.jit
def sirnet_forward(t, packed):
    """t: (N, 1) (or (N,)) float -> (N, 3) float32, matching SIRNet.forward."""
    w_stack, wb_stack = packed
    n = t.shape[0]
    x = jnp.reshape(t.astype(jnp.float32), (1, n))        # batch on the lane axis
    tm, n_pad = _choose_tile(n)
    if n_pad != n:
        x = jnp.pad(x, ((0, 0), (0, n_pad - n)))          # 4 B/sample; negligible
    grid = (n_pad // tm,)

    out = pl.pallas_call(
        _sirnet_kernel,
        out_shape=jax.ShapeDtypeStruct((OUT_ROWS, n_pad), jnp.float32),
        grid_spec=pltpu.PrefetchScalarGridSpec(
            num_scalar_prefetch=0,
            grid=grid,
            in_specs=[
                pl.BlockSpec((1, tm), lambda i: (0, i)),           # x (lane-dense)
                pl.BlockSpec((3, PAD, PAD), lambda i: (0, 0, 0)),  # weights (resident)
                pl.BlockSpec((PAD, 8), lambda i: (0, 0)),          # biases + W1^T
            ],
            out_specs=pl.BlockSpec((OUT_ROWS, tm), lambda i: (0, i)),
        ),
        compiler_params=pltpu.CompilerParams(
            dimension_semantics=("parallel",)),
    )(x, w_stack, wb_stack)

    # Rows 0..2 hold the 3 SIR outputs; transpose back to PyTorch's (N, 3)
    # layout (callers that can consume (3, N) directly can skip this).
    return out[:D_OUT, :n].T


def init_params(key):
    """Deterministic init mimicking nn.Linear default U(-1/sqrt(fan_in), +1/sqrt(fan_in))."""
    dims = [(D_IN, D_H), (D_H, D_H), (D_H, D_H), (D_H, D_OUT)]
    params = []
    for (fan_in, fan_out) in dims:
        key, kw, kb = jax.random.split(key, 3)
        bound = 1.0 / jnp.sqrt(float(fan_in))
        w = jax.random.uniform(kw, (fan_in, fan_out), jnp.float32, -bound, bound)
        b = jax.random.uniform(kb, (fan_out,), jnp.float32, -bound, bound)
        params.append((w, b))
    return params


def _reference_forward(t, params):
    x = t.astype(jnp.float32)
    for i, (w, b) in enumerate(params):
        x = x @ w + b
        if i < len(params) - 1:
            x = jnp.maximum(x, 0.0)
    return x


if __name__ == "__main__":
    key = jax.random.PRNGKey(0)
    params = init_params(key)
    packed = pack_params(params)

    # Single-tile path (grid = 1): tiny batch.
    key, kt = jax.random.split(key)
    t_small = jax.random.uniform(kt, (10, 1), jnp.float32, 0.0, 5.0)
    out_small = jax.block_until_ready(sirnet_forward(t_small, packed))
    ref_small = _reference_forward(t_small, params)
    assert out_small.shape == (10, D_OUT), out_small.shape
    assert jnp.allclose(out_small, ref_small, atol=1e-3, rtol=1e-4)

    # Multi-tile path (grid >= 2, ragged tail), like t = np.linspace(0, 50, 1000).
    n = 300
    t_big = jnp.linspace(0.0, 50.0, n, dtype=jnp.float32).reshape(n, 1)
    out_big = jax.block_until_ready(sirnet_forward(t_big, packed))
    ref_big = _reference_forward(t_big, params)
    assert out_big.shape == (n, D_OUT), out_big.shape
    assert jnp.allclose(out_big, ref_big, atol=1e-3, rtol=1e-4)

    print("KERNEL_OK")
</pallas_src>

<mosaic_0001>
module attributes {stable_mosaic.version = 11 : i64} {
  func.func @_sirnet_kernel(%arg0: i32, %arg1: memref<1x10xf32, #tpu.memory_space<vmem>>, %arg2: memref<3x128x128xf32, #tpu.memory_space<vmem>>, %arg3: memref<128x8xf32, #tpu.memory_space<vmem>>, %arg4: memref<8x10xf32, #tpu.memory_space<vmem>>) attributes {dimension_semantics = [#tpu.dimension_semantics<parallel>], iteration_bounds = array<i64: 1>, scalar_prefetch = 0 : i64, scratch_operands = 0 : i64, tpu.core_type = #tpu.core_type<tc>, window_params = [{transform_indices = @transform_0, window_bounds = array<i64: 1, 10>}, {pipeline_mode = #tpu.pipeline_mode<synchronous>, transform_indices = @transform_1, window_bounds = array<i64: 3, 128, 128>}, {pipeline_mode = #tpu.pipeline_mode<synchronous>, transform_indices = @transform_2, window_bounds = array<i64: 128, 8>}, {transform_indices = @transform_3, window_bounds = array<i64: 8, 10>}]} {
    %c0 = arith.constant 0 : index
    %c0_0 = arith.constant 0 : index
    %0 = vector.load %arg1[%c0, %c0_0] : memref<1x10xf32, #tpu.memory_space<vmem>>, vector<1x10xf32>
    %c0_1 = arith.constant 0 : index
    %c0_2 = arith.constant 0 : index
    %1 = vector.load %arg3[%c0_1, %c0_2] : memref<128x8xf32, #tpu.memory_space<vmem>>, vector<128x8xf32>
    %2 = vector.extract_strided_slice %1 {offsets = [0, 4], sizes = [128, 1], strides = [1, 1]} : vector<128x8xf32> to vector<128x1xf32>
    %3 = vector.broadcast %2 : vector<128x1xf32> to vector<128x10xf32>
    %4 = vector.broadcast %0 : vector<1x10xf32> to vector<128x10xf32>
    %5 = arith.mulf %3, %4 : vector<128x10xf32>
    %6 = vector.extract_strided_slice %1 {offsets = [0, 0], sizes = [128, 1], strides = [1, 1]} : vector<128x8xf32> to vector<128x1xf32>
    %7 = vector.broadcast %6 : vector<128x1xf32> to vector<128x10xf32>
    %8 = arith.addf %5, %7 : vector<128x10xf32>
    %cst = arith.constant 0.000000e+00 : f32
    %9 = vector.broadcast %cst : f32 to vector<128x10xf32>
    %10 = arith.maximumf %8, %9 : vector<128x10xf32>
    %c0_3 = arith.constant 0 : index
    %c0_4 = arith.constant 0 : index
    %c0_5 = arith.constant 0 : index
    %11 = vector.load %arg2[%c0_3, %c0_4, %c0_5] : memref<3x128x128xf32, #tpu.memory_space<vmem>>, vector<1x128x128xf32>
    %12 = vector.shape_cast %11 : vector<1x128x128xf32> to vector<128x128xf32>
    %cst_6 = arith.constant dense<0.000000e+00> : vector<128x10xf32>
    %13 = tpu.matmul %12, %10, %cst_6 {dimension_numbers = #tpu.dot_dimension_numbers<[1], [0], [0], [1], [0, 0, 1, 1], [], []>} : vector<128x128xf32>, vector<128x10xf32>, vector<128x10xf32> -> vector<128x10xf32>
    %14 = vector.extract_strided_slice %1 {offsets = [0, 1], sizes = [128, 1], strides = [1, 1]} : vector<128x8xf32> to vector<128x1xf32>
    %15 = vector.broadcast %14 : vector<128x1xf32> to vector<128x10xf32>
    %16 = arith.addf %13, %15 : vector<128x10xf32>
    %cst_7 = arith.constant 0.000000e+00 : f32
    %17 = vector.broadcast %cst_7 : f32 to vector<128x10xf32>
    %18 = arith.maximumf %16, %17 : vector<128x10xf32>
    %c1 = arith.constant 1 : index
    %c0_8 = arith.constant 0 : index
    %c0_9 = arith.constant 0 : index
    %19 = vector.load %arg2[%c1, %c0_8, %c0_9] : memref<3x128x128xf32, #tpu.memory_space<vmem>>, vector<1x128x128xf32>
    %20 = vector.shape_cast %19 : vector<1x128x128xf32> to vector<128x128xf32>
    %cst_10 = arith.constant dense<0.000000e+00> : vector<128x10xf32>
    %21 = tpu.matmul %20, %18, %cst_10 {dimension_numbers = #tpu.dot_dimension_numbers<[1], [0], [0], [1], [0, 0, 1, 1], [], []>} : vector<128x128xf32>, vector<128x10xf32>, vector<128x10xf32> -> vector<128x10xf32>
    %22 = vector.extract_strided_slice %1 {offsets = [0, 2], sizes = [128, 1], strides = [1, 1]} : vector<128x8xf32> to vector<128x1xf32>
    %23 = vector.broadcast %22 : vector<128x1xf32> to vector<128x10xf32>
    %24 = arith.addf %21, %23 : vector<128x10xf32>
    %cst_11 = arith.constant 0.000000e+00 : f32
    %25 = vector.broadcast %cst_11 : f32 to vector<128x10xf32>
    %26 = arith.maximumf %24, %25 : vector<128x10xf32>
    %c2 = arith.constant 2 : index
    %c0_12 = arith.constant 0 : index
    %c0_13 = arith.constant 0 : index
    %27 = vector.load %arg2[%c2, %c0_12, %c0_13] : memref<3x128x128xf32, #tpu.memory_space<vmem>>, vector<1x128x128xf32>
    %28 = vector.shape_cast %27 : vector<1x128x128xf32> to vector<128x128xf32>
    %cst_14 = arith.constant dense<0.000000e+00> : vector<128x10xf32>
    %29 = tpu.matmul %28, %26, %cst_14 {dimension_numbers = #tpu.dot_dimension_numbers<[1], [0], [0], [1], [0, 0, 1, 1], [], []>} : vector<128x128xf32>, vector<128x10xf32>, vector<128x10xf32> -> vector<128x10xf32>
    %30 = vector.extract_strided_slice %1 {offsets = [0, 3], sizes = [128, 1], strides = [1, 1]} : vector<128x8xf32> to vector<128x1xf32>
    %31 = vector.broadcast %30 : vector<128x1xf32> to vector<128x10xf32>
    %32 = arith.addf %29, %31 : vector<128x10xf32>
    %33 = vector.extract_strided_slice %32 {offsets = [0, 0], sizes = [8, 10], strides = [1, 1]} : vector<128x10xf32> to vector<8x10xf32>
    %c0_15 = arith.constant 0 : index
    %c0_16 = arith.constant 0 : index
    %34 = vector.load %arg4[%c0_15, %c0_16] : memref<8x10xf32, #tpu.memory_space<vmem>>, vector<8x10xf32>
    tpu.vector_store %arg4[%c0_15, %c0_16], %33 {strides = array<i32>} : memref<8x10xf32, #tpu.memory_space<vmem>>, vector<8x10xf32>,
    return
  }
  func.func @transform_0(%arg0: i32) -> (i32, i32) {
    %c0_i32 = arith.constant 0 : i32
    %c0_i32_0 = arith.constant 0 : i32
    return %c0_i32, %arg0 : i32, i32
  }
  func.func @transform_1(%arg0: i32) -> (i32, i32, i32) {
    %c0_i32 = arith.constant 0 : i32
    %c0_i32_0 = arith.constant 0 : i32
    %c0_i32_1 = arith.constant 0 : i32
    %c0_i32_2 = arith.constant 0 : i32
    return %c0_i32, %c0_i32_0, %c0_i32_1 : i32, i32, i32
  }
  func.func @transform_2(%arg0: i32) -> (i32, i32) {
    %c0_i32 = arith.constant 0 : i32
    %c0_i32_0 = arith.constant 0 : i32
    %c0_i32_1 = arith.constant 0 : i32
    return %c0_i32, %c0_i32_0 : i32, i32
  }
  func.func @transform_3(%arg0: i32) -> (i32, i32) {
    %c0_i32 = arith.constant 0 : i32
    %c0_i32_0 = arith.constant 0 : i32
    return %c0_i32, %arg0 : i32, i32
  }
}

</mosaic_0001>

<llo_original>
// kernel: sirnet_forward.1
$region0: #{sirnet_forward.1}
  #allocation0 [shape = 'u32[]', space=smem, size = 0x4, offset = 0x4, fixed_abs, tag = 'smem constant byte address 0x4 - core index']
  #allocation1 [shape = 'u32[144,128]{1,0:T(1,128)}', space=vmem, size = 0x12000, scoped, tag = 'internal scratch']
  %s0 = inlined_call_operand.vmem [shape: f32[1,10], index: 0, kind: input, shape index: {}]
  %s1 = inlined_call_operand.hbm [shape: f32[3,128,128], index: 1, kind: input, shape index: {}]
  %s2 = inlined_call_operand.vmem [shape: f32[128,8], index: 2, kind: input, shape index: {}]
  %s3 = inlined_call_operand.vmem [shape: f32[8,10], index: 3, kind: output, shape index: {}]
  %s4 = sld [smem:[#allocation0]]
  $region26: #{sirnet_forward.1} parent=0
    _
  %s6 = ssub.s32 1, %s4
  %s7 = scalar_select 0, %s6, %s4
  $region1: #{sirnet_forward.1} parent=0
    #allocation2 [shape = 'u8[196608]{0}', space=vmem, size = 0x30000, scoped, tag = 'input window, operand 1, single buffered']
    #allocation3 [shape = 's32[1]{0}', space=sflag, size = 0x4, scoped, tag = 'scoped memory for sirnet_forward.1']
    %8 = vsyncpa [#allocation3], 0
    // Predicated region
    $region2: #{sirnet_forward.1} parent=1 // pred_check
      _
    $region3: #{sirnet_forward.1} parent=1 // pred_check_branch
      %10 = sbr.rel (0) target = $region5
    $region4: #{sirnet_forward.1} parent=1 // pred_region
      _
    $region5: #{sirnet_forward.1} parent=1 // pred_fallthru
      _
    // Predicated region
    $region6: #{sirnet_forward.1} parent=1 // pred_check
      _
    $region7: #{sirnet_forward.1} parent=1 // pred_check_branch
      %12 = sbr.rel (0) target = $region9
    $region8: #{sirnet_forward.1} parent=1 // pred_region
      %s14 = ssub.s32 6144, 6144
      %15 = vsyncadd [#allocation3], %s14
      %s16 = sshll.u32 [#allocation2], 4
      %s17 = int_to_ptr.vmem [resolvable:$true] %s16
      %22 = dma.hbm_to_vmem [thread:$0]  %s1, 6144, %s17, [#allocation3], 128, 128, 8
    $region9: #{sirnet_forward.1} parent=1 // pred_fallthru
      _
    // Predicated region
    $region10: #{sirnet_forward.1} parent=1 // pred_check
      _
    $region11: #{sirnet_forward.1} parent=1 // pred_check_branch
      %24 = sbr.rel (0) target = $region13
    $region12: #{sirnet_forward.1} parent=1 // pred_region
      _
    $region13: #{sirnet_forward.1} parent=1 // pred_fallthru
      _
    // Predicated region
    $region14: #{sirnet_forward.1} parent=1 // pred_check
      _
    $region15: #{sirnet_forward.1} parent=1 // pred_check_branch
      %26 = sbr.rel (0) target = $region17
    $region16: #{sirnet_forward.1} parent=1 // pred_region
      %27 = dma.done [#allocation3], 6144
    $region17: #{sirnet_forward.1} parent=1 // pred_fallthru
      _
    %v28 = vld [vmem:[%s0] sm:$0x1]
    %v29 = vld [vmem:[%s2] sm:$0xff]
    %v30 = vld [vmem:[%s2 + $0x8] sm:$0xff]
    %v31 = vld [vmem:[%s2 + $0x10] sm:$0xff]
    %v32 = vld [vmem:[%s2 + $0x18] sm:$0xff]
    %v33 = vld [vmem:[%s2 + $0x20] sm:$0xff]
    %v34 = vld [vmem:[%s2 + $0x28] sm:$0xff]
    %v35 = vld [vmem:[%s2 + $0x30] sm:$0xff]
    %v36 = vld [vmem:[%s2 + $0x38] sm:$0xff]
    %v37 = vld [vmem:[%s2 + $0x40] sm:$0xff]
    %v38 = vld [vmem:[%s2 + $0x48] sm:$0xff]
    %v39 = vld [vmem:[%s2 + $0x50] sm:$0xff]
    %v40 = vld [vmem:[%s2 + $0x58] sm:$0xff]
    %v41 = vld [vmem:[%s2 + $0x60] sm:$0xff]
    %v42 = vld [vmem:[%s2 + $0x68] sm:$0xff]
    %v43 = vld [vmem:[%s2 + $0x70] sm:$0xff]
    %v44 = vld [vmem:[%s2 + $0x78] sm:$0xff]
    %46 = vset.pattern.permute.xlu0 4
    %47 = vperm.xlu0 %46, %v29
    %v48 = vpop.permute.xlu0 %47
    %51 = vset.pattern.permute.xlu0 4
    %52 = vperm.xlu0 %51, %v30
    %v53 = vpop.permute.xlu0 %52
    %56 = vset.pattern.permute.xlu0 4
    %57 = vperm.xlu0 %56, %v31
    %v58 = vpop.permute.xlu0 %57
    %61 = vset.pattern.permute.xlu0 4
    %62 = vperm.xlu0 %61, %v32
    %v63 = vpop.permute.xlu0 %62
    %66 = vset.pattern.permute.xlu0 4
    %67 = vperm.xlu0 %66, %v33
    %v68 = vpop.permute.xlu0 %67
    %71 = vset.pattern.permute.xlu0 4
    %72 = vperm.xlu0 %71, %v34
    %v73 = vpop.permute.xlu0 %72
    %76 = vset.pattern.permute.xlu0 4
    %77 = vperm.xlu0 %76, %v35
    %v78 = vpop.permute.xlu0 %77
    %81 = vset.pattern.permute.xlu0 4
    %82 = vperm.xlu0 %81, %v36
    %v83 = vpop.permute.xlu0 %82
    %86 = vset.pattern.permute.xlu0 4
    %87 = vperm.xlu0 %86, %v37
    %v88 = vpop.permute.xlu0 %87
    %91 = vset.pattern.permute.xlu0 4
    %92 = vperm.xlu0 %91, %v38
    %v93 = vpop.permute.xlu0 %92
    %96 = vset.pattern.permute.xlu0 4
    %97 = vperm.xlu0 %96, %v39
    %v98 = vpop.permute.xlu0 %97
    %101 = vset.pattern.permute.xlu0 4
    %102 = vperm.xlu0 %101, %v40
    %v103 = vpop.permute.xlu0 %102
    %106 = vset.pattern.permute.xlu0 4
    %107 = vperm.xlu0 %106, %v41
    %v108 = vpop.permute.xlu0 %107
    %111 = vset.pattern.permute.xlu0 4
    %112 = vperm.xlu0 %111, %v42
    %v113 = vpop.permute.xlu0 %112
    %116 = vset.pattern.permute.xlu0 4
    %117 = vperm.xlu0 %116, %v43
    %v118 = vpop.permute.xlu0 %117
    %121 = vset.pattern.permute.xlu0 4
    %122 = vperm.xlu0 %121, %v44
    %v123 = vpop.permute.xlu0 %122
    %v126 = vlaneseq
    %v127 = vshrl.u32 %v126, 7
    %v128 = vsub.s32 0, %v127
    %v129 = vrot.slane %v28, %v128
    %v131 = vmul.f32 %v48, %v129
    %v132 = vmul.f32 %v53, %v129
    %v133 = vmul.f32 %v58, %v129
    %v134 = vmul.f32 %v63, %v129
    %v135 = vmul.f32 %v68, %v129
    %v136 = vmul.f32 %v73, %v129
    %v137 = vmul.f32 %v78, %v129
    %v138 = vmul.f32 %v83, %v129
    %v139 = vmul.f32 %v88, %v129
    %v140 = vmul.f32 %v93, %v129
    %v141 = vmul.f32 %v98, %v129
    %v142 = vmul.f32 %v103, %v129
    %v143 = vmul.f32 %v108, %v129
    %v144 = vmul.f32 %v113, %v129
    %v145 = vmul.f32 %v118, %v129
    %v146 = vmul.f32 %v123, %v129
    %147 = vset.pattern.permute.xlu0 0
    %148 = vperm.xlu0 %147, %v29
    %v149 = vpop.permute.xlu0 %148
    %151 = vset.pattern.permute.xlu0 0
    %152 = vperm.xlu0 %151, %v30
    %v153 = vpop.permute.xlu0 %152
    %155 = vset.pattern.permute.xlu0 0
    %156 = vperm.xlu0 %155, %v31
    %v157 = vpop.permute.xlu0 %156
    %159 = vset.pattern.permute.xlu0 0
    %160 = vperm.xlu0 %159, %v32
    %v161 = vpop.permute.xlu0 %160
    %163 = vset.pattern.permute.xlu0 0
    %164 = vperm.xlu0 %163, %v33
    %v165 = vpop.permute.xlu0 %164
    %167 = vset.pattern.permute.xlu0 0
    %168 = vperm.xlu0 %167, %v34
    %v169 = vpop.permute.xlu0 %168
    %171 = vset.pattern.permute.xlu0 0
    %172 = vperm.xlu0 %171, %v35
    %v173 = vpop.permute.xlu0 %172
    %175 = vset.pattern.permute.xlu0 0
    %176 = vperm.xlu0 %175, %v36
    %v177 = vpop.permute.xlu0 %176
    %179 = vset.pattern.permute.xlu0 0
    %180 = vperm.xlu0 %179, %v37
    %v181 = vpop.permute.xlu0 %180
    %183 = vset.pattern.permute.xlu0 0
    %184 = vperm.xlu0 %183, %v38
    %v185 = vpop.permute.xlu0 %184
    %187 = vset.pattern.permute.xlu0 0
    %188 = vperm.xlu0 %187, %v39
    %v189 = vpop.permute.xlu0 %188
    %191 = vset.pattern.permute.xlu0 0
    %192 = vperm.xlu0 %191, %v40
    %v193 = vpop.permute.xlu0 %192
    %195 = vset.pattern.permute.xlu0 0
    %196 = vperm.xlu0 %195, %v41
    %v197 = vpop.permute.xlu0 %196
    %199 = vset.pattern.permute.xlu0 0
    %200 = vperm.xlu0 %199, %v42
    %v201 = vpop.permute.xlu0 %200
    %203 = vset.pattern.permute.xlu0 0
    %204 = vperm.xlu0 %203, %v43
    %v205 = vpop.permute.xlu0 %204
    %207 = vset.pattern.permute.xlu0 0
    %208 = vperm.xlu0 %207, %v44
    %v209 = vpop.permute.xlu0 %208
    %v211 = vadd.f32 %v131, %v149
    %v212 = vadd.f32 %v132, %v153
    %v213 = vadd.f32 %v133, %v157
    %v214 = vadd.f32 %v134, %v161
    %v215 = vadd.f32 %v135, %v165
    %v216 = vadd.f32 %v136, %v169
    %v217 = vadd.f32 %v137, %v173
    %v218 = vadd.f32 %v138, %v177
    %v219 = vadd.f32 %v139, %v181
    %v220 = vadd.f32 %v140, %v185
    %v221 = vadd.f32 %v141, %v189
    %v222 = vadd.f32 %v142, %v193
    %v223 = vadd.f32 %v143, %v197
    %v224 = vadd.f32 %v144, %v201
    %v225 = vadd.f32 %v145, %v205
    %v226 = vadd.f32 %v146, %v209
    %v227 = vmax.f32 %v211, 0.0
    %v228 = vmax.f32 %v212, 0.0
    %v229 = vmax.f32 %v213, 0.0
    %v230 = vmax.f32 %v214, 0.0
    %v231 = vmax.f32 %v215, 0.0
    %v232 = vmax.f32 %v216, 0.0
    %v233 = vmax.f32 %v217, 0.0
    %v234 = vmax.f32 %v218, 0.0
    %v235 = vmax.f32 %v219, 0.0
    %v236 = vmax.f32 %v220, 0.0
    %v237 = vmax.f32 %v221, 0.0
    %v238 = vmax.f32 %v222, 0.0
    %v239 = vmax.f32 %v223, 0.0
    %v240 = vmax.f32 %v224, 0.0
    %v241 = vmax.f32 %v225, 0.0
    %v242 = vmax.f32 %v226, 0.0
    %v243 = vld [vmem:[#allocation2] sm:$0xff]
    %v244 = vld [vmem:[#allocation2 + $0x8] sm:$0xff]
    %v245 = vld [vmem:[#allocation2 + $0x10] sm:$0xff]
    %v246 = vld [vmem:[#allocation2 + $0x18] sm:$0xff]
    %v247 = vld [vmem:[#allocation2 + $0x20] sm:$0xff]
    %v248 = vld [vmem:[#allocation2 + $0x28] sm:$0xff]
    %v249 = vld [vmem:[#allocation2 + $0x30] sm:$0xff]
    %v250 = vld [vmem:[#allocation2 + $0x38] sm:$0xff]
    %v251 = vld [vmem:[#allocation2 + $0x40] sm:$0xff]
    %v252 = vld [vmem:[#allocation2 + $0x48] sm:$0xff]
    %v253 = vld [vmem:[#allocation2 + $0x50] sm:$0xff]
    %v254 = vld [vmem:[#allocation2 + $0x58] sm:$0xff]
    %v255 = vld [vmem:[#allocation2 + $0x60] sm:$0xff]
    %v256 = vld [vmem:[#allocation2 + $0x68] sm:$0xff]
    %v257 = vld [vmem:[#allocation2 + $0x70] sm:$0xff]
    %v258 = vld [vmem:[#allocation2 + $0x78] sm:$0xff]
    %259 = vset.pattern.permute.xlu0 1
    %260 = vperm.xlu0 %259, %v29
    %v261 = vpop.permute.xlu0 %260
    %263 = vset.pattern.permute.xlu0 1
    %264 = vperm.xlu0 %263, %v30
    %v265 = vpop.permute.xlu0 %264
    %267 = vset.pattern.permute.xlu0 1
    %268 = vperm.xlu0 %267, %v31
    %v269 = vpop.permute.xlu0 %268
    %271 = vset.pattern.permute.xlu0 1
    %272 = vperm.xlu0 %271, %v32
    %v273 = vpop.permute.xlu0 %272
    %275 = vset.pattern.permute.xlu0 1
    %276 = vperm.xlu0 %275, %v33
    %v277 = vpop.permute.xlu0 %276
    %279 = vset.pattern.permute.xlu0 1
    %280 = vperm.xlu0 %279, %v34
    %v281 = vpop.permute.xlu0 %280
    %283 = vset.pattern.permute.xlu0 1
    %284 = vperm.xlu0 %283, %v35
    %v285 = vpop.permute.xlu0 %284
    %287 = vset.pattern.permute.xlu0 1
    %288 = vperm.xlu0 %287, %v36
    %v289 = vpop.permute.xlu0 %288
    %291 = vset.pattern.permute.xlu0 1
    %292 = vperm.xlu0 %291, %v37
    %v293 = vpop.permute.xlu0 %292
    %295 = vset.pattern.permute.xlu0 1
    %296 = vperm.xlu0 %295, %v38
    %v297 = vpop.permute.xlu0 %296
    %299 = vset.pattern.permute.xlu0 1
    %300 = vperm.xlu0 %299, %v39
    %v301 = vpop.permute.xlu0 %300
    %303 = vset.pattern.permute.xlu0 1
    %304 = vperm.xlu0 %303, %v40
    %v305 = vpop.permute.xlu0 %304
    %307 = vset.pattern.permute.xlu0 1
    %308 = vperm.xlu0 %307, %v41
    %v309 = vpop.permute.xlu0 %308
    %311 = vset.pattern.permute.xlu0 1
    %312 = vperm.xlu0 %311, %v42
    %v313 = vpop.permute.xlu0 %312
    %315 = vset.pattern.permute.xlu0 1
    %316 = vperm.xlu0 %315, %v43
    %v317 = vpop.permute.xlu0 %316
    %319 = vset.pattern.permute.xlu0 1
    %320 = vperm.xlu0 %319, %v44
    %v321 = vpop.permute.xlu0 %320
    %323 = vmatprep.subr.mxu0 0.0
    %324 = vmatpush1.msra.mxu0 %v242
    %325 = vmatprep.subr.mxu0 0.0
    %326 = vmatpush1.msra.mxu0 %v241
    %327 = vmatprep.subr.mxu0 0.0
    %328 = vmatpush1.msra.mxu0 %v240
    %329 = vmatprep.subr.mxu0 0.0
    %330 = vmatpush1.msra.mxu0 %v239
    %331 = vmatprep.subr.mxu0 0.0
    %332 = vmatpush1.msra.mxu0 %v238
    %333 = vmatprep.subr.mxu0 0.0
    %334 = vmatpush1.msra.mxu0 %v237
    %335 = vmatprep.subr.mxu0 0.0
    %336 = vmatpush1.msra.mxu0 %v236
    %337 = vmatprep.subr.mxu0 0.0
    %338 = vmatpush1.msra.mxu0 %v235
    %339 = vmatprep.subr.mxu0 0.0
    %340 = vmatpush1.msra.mxu0 %v234
    %341 = vmatprep.subr.mxu0 0.0
    %342 = vmatpush1.msra.mxu0 %v233
    %343 = vmatprep.subr.mxu0 0.0
    %344 = vmatpush1.msra.mxu0 %v232
    %345 = vmatprep.subr.mxu0 0.0
    %346 = vmatpush1.msra.mxu0 %v231
    %347 = vmatprep.subr.mxu0 0.0
    %348 = vmatpush1.msra.mxu0 %v230
    %349 = vmatprep.subr.mxu0 0.0
    %350 = vmatpush1.msra.mxu0 %v229
    %351 = vmatprep.subr.mxu0 0.0
    %352 = vmatpush1.msra.mxu0 %v228
    %353 = vmatprep.subr.mxu0 0.0
    %354 = vmatpush1.msra.mxu0 %v227
    %355 = vmatprep.subr.mxu0 0.0
    %356 = vmatpush2.msra.mxu0 0.0
    %357 = vmatprep.subr.mxu0 0.0
    %358 = vmatpush2.msra.mxu0 0.0
    %359 = vmatprep.subr.mxu0 0.0
    %360 = vmatpush2.msra.mxu0 0.0
    %361 = vmatprep.subr.mxu0 0.0
    %362 = vmatpush2.msra.mxu0 0.0
    %363 = vmatprep.subr.mxu0 0.0
    %364 = vmatpush2.msra.mxu0 0.0
    %365 = vmatprep.subr.mxu0 0.0
    %366 = vmatpush2.msra.mxu0 0.0
    %367 = vmatprep.subr.mxu0 0.0
    %368 = vmatpush2.msra.mxu0 0.0
    %369 = vmatprep.subr.mxu0 0.0
    %370 = vmatpush2.msra.mxu0 0.0
    %371 = vmatprep.subr.mxu0 0.0
    %372 = vmatpush2.msra.mxu0 0.0
    %373 = vmatprep.subr.mxu0 0.0
    %374 = vmatpush2.msra.mxu0 0.0
    %375 = vmatprep.subr.mxu0 0.0
    %376 = vmatpush2.msra.mxu0 0.0
    %377 = vmatprep.subr.mxu0 0.0
    %378 = vmatpush2.msra.mxu0 0.0
    %379 = vmatprep.subr.mxu0 0.0
    %380 = vmatpush2.msra.mxu0 0.0
    %381 = vmatprep.subr.mxu0 0.0
    %382 = vmatpush2.msra.mxu0 0.0
    %383 = vmatprep.subr.mxu0 0.0
    %384 = vmatpush2.msra.mxu0 0.0
    %385 = vmatprep.subr.mxu0 0.0
    %386 = vmatpush2.msra.mxu0 0.0
    %387 = vmatprep.mubr.f32.mxu0 0.0
    %388 = vmatmul.mubr.f32.gmra.mxu0 %v243
    %v389 = vpop.f32.mrf.mxu0
    %v390 = vadd.f32 %v261, %v389
    %v391 = vpop.f32.mrf.mxu0
    %392 = vmatprep.mubr.f32.mxu0 0.0
    %393 = vmatmul.mubr.f32.gmra.mxu0 %v244
    %v394 = vpop.f32.mrf.mxu0
    %v395 = vadd.f32 %v265, %v394
    %v396 = vpop.f32.mrf.mxu0
    %397 = vmatprep.mubr.f32.mxu0 0.0
    %398 = vmatmul.mubr.f32.gmra.mxu0 %v245
    %v399 = vpop.f32.mrf.mxu0
    %v400 = vadd.f32 %v269, %v399
    %v401 = vpop.f32.mrf.mxu0
    %402 = vmatprep.mubr.f32.mxu0 0.0
    %403 = vmatmul.mubr.f32.gmra.mxu0 %v246
    %v404 = vpop.f32.mrf.mxu0
    %v405 = vadd.f32 %v273, %v404
    %v406 = vpop.f32.mrf.mxu0
    %407 = vmatprep.mubr.f32.mxu0 0.0
    %408 = vmatmul.mubr.f32.gmra.mxu0 %v247
    %v409 = vpop.f32.mrf.mxu0
    %v410 = vadd.f32 %v277, %v409
    %v411 = vpop.f32.mrf.mxu0
    %412 = vmatprep.mubr.f32.mxu0 0.0
    %413 = vmatmul.mubr.f32.gmra.mxu0 %v248
    %v414 = vpop.f32.mrf.mxu0
    %v415 = vadd.f32 %v281, %v414
    %v416 = vpop.f32.mrf.mxu0
    %417 = vmatprep.mubr.f32.mxu0 0.0
    %418 = vmatmul.mubr.f32.gmra.mxu0 %v249
    %v419 = vpop.f32.mrf.mxu0
    %v420 = vadd.f32 %v285, %v419
    %v421 = vpop.f32.mrf.mxu0
    %422 = vmatprep.mubr.f32.mxu0 0.0
    %423 = vmatmul.mubr.f32.gmra.mxu0 %v250
    %v424 = vpop.f32.mrf.mxu0
    %v425 = vadd.f32 %v289, %v424
    %v426 = vpop.f32.mrf.mxu0
    %427 = vmatprep.mubr.f32.mxu0 0.0
    %428 = vmatmul.mubr.f32.gmra.mxu0 %v251
    %v429 = vpop.f32.mrf.mxu0
    %v430 = vadd.f32 %v293, %v429
    %v431 = vpop.f32.mrf.mxu0
    %432 = vmatprep.mubr.f32.mxu0 0.0
    %433 = vmatmul.mubr.f32.gmra.mxu0 %v252
    %v434 = vpop.f32.mrf.mxu0
    %v435 = vadd.f32 %v297, %v434
    %v436 = vpop.f32.mrf.mxu0
    %437 = vmatprep.mubr.f32.mxu0 0.0
    %438 = vmatmul.mubr.f32.gmra.mxu0 %v253
    %v439 = vpop.f32.mrf.mxu0
    %v440 = vadd.f32 %v301, %v439
    %v441 = vpop.f32.mrf.mxu0
    %442 = vmatprep.mubr.f32.mxu0 0.0
    %443 = vmatmul.mubr.f32.gmra.mxu0 %v254
    %v444 = vpop.f32.mrf.mxu0
    %v445 = vadd.f32 %v305, %v444
    %v446 = vpop.f32.mrf.mxu0
    %447 = vmatprep.mubr.f32.mxu0 0.0
    %448 = vmatmul.mubr.f32.gmra.mxu0 %v255
    %v449 = vpop.f32.mrf.mxu0
    %v450 = vadd.f32 %v309, %v449
    %v451 = vpop.f32.mrf.mxu0
    %452 = vmatprep.mubr.f32.mxu0 0.0
    %453 = vmatmul.mubr.f32.gmra.mxu0 %v256
    %v454 = vpop.f32.mrf.mxu0
    %v455 = vadd.f32 %v313, %v454
    %v456 = vpop.f32.mrf.mxu0
    %457 = vmatprep.mubr.f32.mxu0 0.0
    %458 = vmatmul.mubr.f32.gmra.mxu0 %v257
    %v459 = vpop.f32.mrf.mxu0
    %v460 = vadd.f32 %v317, %v459
    %v461 = vpop.f32.mrf.mxu0
    %462 = vmatprep.mubr.f32.mxu0 0.0
    %463 = vmatmul.mubr.f32.gmra.mxu0 %v258
    %v464 = vpop.f32.mrf.mxu0
    %v465 = vadd.f32 %v321, %v464
    %v466 = vpop.f32.mrf.mxu0
    %467 = vdwg.mxu0
    %v468 = vmax.f32 %v390, 0.0
    %v469 = vmax.f32 %v395, 0.0
    %v470 = vmax.f32 %v400, 0.0
    %v471 = vmax.f32 %v405, 0.0
    %v472 = vmax.f32 %v410, 0.0
    %v473 = vmax.f32 %v415, 0.0
    %v474 = vmax.f32 %v420, 0.0
    %v475 = vmax.f32 %v425, 0.0
    %v476 = vmax.f32 %v430, 0.0
    %v477 = vmax.f32 %v435, 0.0
    %v478 = vmax.f32 %v440, 0.0
    %v479 = vmax.f32 %v445, 0.0
    %v480 = vmax.f32 %v450, 0.0
    %v481 = vmax.f32 %v455, 0.0
    %v482 = vmax.f32 %v460, 0.0
    %v483 = vmax.f32 %v465, 0.0
    %s484 = scalar_lea.vmem [#allocation2], 128
    %v485 = vld [vmem:[%s484] sm:$0xff]
    %v486 = vld [vmem:[%s484 + $0x8] sm:$0xff]
    %v487 = vld [vmem:[%s484 + $0x10] sm:$0xff]
    %v488 = vld [vmem:[%s484 + $0x18] sm:$0xff]
    %v489 = vld [vmem:[%s484 + $0x20] sm:$0xff]
    %v490 = vld [vmem:[%s484 + $0x28] sm:$0xff]
    %v491 = vld [vmem:[%s484 + $0x30] sm:$0xff]
    %v492 = vld [vmem:[%s484 + $0x38] sm:$0xff]
    %v493 = vld [vmem:[%s484 + $0x40] sm:$0xff]
    %v494 = vld [vmem:[%s484 + $0x48] sm:$0xff]
    %v495 = vld [vmem:[%s484 + $0x50] sm:$0xff]
    %v496 = vld [vmem:[%s484 + $0x58] sm:$0xff]
    %v497 = vld [vmem:[%s484 + $0x60] sm:$0xff]
    %v498 = vld [vmem:[%s484 + $0x68] sm:$0xff]
    %v499 = vld [vmem:[%s484 + $0x70] sm:$0xff]
    %v500 = vld [vmem:[%s484 + $0x78] sm:$0xff]
    %501 = vset.pattern.permute.xlu0 2
    %502 = vperm.xlu0 %501, %v29
    %v503 = vpop.permute.xlu0 %502
    %505 = vset.pattern.permute.xlu0 2
    %506 = vperm.xlu0 %505, %v30
    %v507 = vpop.permute.xlu0 %506
    %509 = vset.pattern.permute.xlu0 2
    %510 = vperm.xlu0 %509, %v31
    %v511 = vpop.permute.xlu0 %510
    %513 = vset.pattern.permute.xlu0 2
    %514 = vperm.xlu0 %513, %v32
    %v515 = vpop.permute.xlu0 %514
    %517 = vset.pattern.permute.xlu0 2
    %518 = vperm.xlu0 %517, %v33
    %v519 = vpop.permute.xlu0 %518
    %521 = vset.pattern.permute.xlu0 2
    %522 = vperm.xlu0 %521, %v34
    %v523 = vpop.permute.xlu0 %522
    %525 = vset.pattern.permute.xlu0 2
    %526 = vperm.xlu0 %525, %v35
    %v527 = vpop.permute.xlu0 %526
    %529 = vset.pattern.permute.xlu0 2
    %530 = vperm.xlu0 %529, %v36
    %v531 = vpop.permute.xlu0 %530
    %533 = vset.pattern.permute.xlu0 2
    %534 = vperm.xlu0 %533, %v37
    %v535 = vpop.permute.xlu0 %534
    %537 = vset.pattern.permute.xlu0 2
    %538 = vperm.xlu0 %537, %v38
    %v539 = vpop.permute.xlu0 %538
    %541 = vset.pattern.permute.xlu0 2
    %542 = vperm.xlu0 %541, %v39
    %v543 = vpop.permute.xlu0 %542
    %545 = vset.pattern.permute.xlu0 2
    %546 = vperm.xlu0 %545, %v40
    %v547 = vpop.permute.xlu0 %546
    %549 = vset.pattern.permute.xlu0 2
    %550 = vperm.xlu0 %549, %v41
    %v551 = vpop.permute.xlu0 %550
    %553 = vset.pattern.permute.xlu0 2
    %554 = vperm.xlu0 %553, %v42
    %v555 = vpop.permute.xlu0 %554
    %557 = vset.pattern.permute.xlu0 2
    %558 = vperm.xlu0 %557, %v43
    %v559 = vpop.permute.xlu0 %558
    %561 = vset.pattern.permute.xlu0 2
    %562 = vperm.xlu0 %561, %v44
    %v563 = vpop.permute.xlu0 %562
    %565 = vmatprep.subr.mxu0 0.0
    %566 = vmatpush1.msra.mxu0 %v483
    %567 = vmatprep.subr.mxu0 0.0
    %568 = vmatpush1.msra.mxu0 %v482
    %569 = vmatprep.subr.mxu0 0.0
    %570 = vmatpush1.msra.mxu0 %v481
    %571 = vmatprep.subr.mxu0 0.0
    %572 = vmatpush1.msra.mxu0 %v480
    %573 = vmatprep.subr.mxu0 0.0
    %574 = vmatpush1.msra.mxu0 %v479
    %575 = vmatprep.subr.mxu0 0.0
    %576 = vmatpush1.msra.mxu0 %v478
    %577 = vmatprep.subr.mxu0 0.0
    %578 = vmatpush1.msra.mxu0 %v477
    %579 = vmatprep.subr.mxu0 0.0
    %580 = vmatpush1.msra.mxu0 %v476
    %581 = vmatprep.subr.mxu0 0.0
    %582 = vmatpush1.msra.mxu0 %v475
    %583 = vmatprep.subr.mxu0 0.0
    %584 = vmatpush1.msra.mxu0 %v474
    %585 = vmatprep.subr.mxu0 0.0
    %586 = vmatpush1.msra.mxu0 %v473
    %587 = vmatprep.subr.mxu0 0.0
    %588 = vmatpush1.msra.mxu0 %v472
    %589 = vmatprep.subr.mxu0 0.0
    %590 = vmatpush1.msra.mxu0 %v471
    %591 = vmatprep.subr.mxu0 0.0
    %592 = vmatpush1.msra.mxu0 %v470
    %593 = vmatprep.subr.mxu0 0.0
    %594 = vmatpush1.msra.mxu0 %v469
    %595 = vmatprep.subr.mxu0 0.0
    %596 = vmatpush1.msra.mxu0 %v468
    %597 = vmatprep.subr.mxu0 0.0
    %598 = vmatpush2.msra.mxu0 0.0
    %599 = vmatprep.subr.mxu0 0.0
    %600 = vmatpush2.msra.mxu0 0.0
    %601 = vmatprep.subr.mxu0 0.0
    %602 = vmatpush2.msra.mxu0 0.0
    %603 = vmatprep.subr.mxu0 0.0
    %604 = vmatpush2.msra.mxu0 0.0
    %605 = vmatprep.subr.mxu0 0.0
    %606 = vmatpush2.msra.mxu0 0.0
    %607 = vmatprep.subr.mxu0 0.0
    %608 = vmatpush2.msra.mxu0 0.0
    %609 = vmatprep.subr.mxu0 0.0
    %610 = vmatpush2.msra.mxu0 0.0
    %611 = vmatprep.subr.mxu0 0.0
    %612 = vmatpush2.msra.mxu0 0.0
    %613 = vmatprep.subr.mxu0 0.0
    %614 = vmatpush2.msra.mxu0 0.0
    %615 = vmatprep.subr.mxu0 0.0
    %616 = vmatpush2.msra.mxu0 0.0
    %617 = vmatprep.subr.mxu0 0.0
    %618 = vmatpush2.msra.mxu0 0.0
    %619 = vmatprep.subr.mxu0 0.0
    %620 = vmatpush2.msra.mxu0 0.0
    %621 = vmatprep.subr.mxu0 0.0
    %622 = vmatpush2.msra.mxu0 0.0
    %623 = vmatprep.subr.mxu0 0.0
    %624 = vmatpush2.msra.mxu0 0.0
    %625 = vmatprep.subr.mxu0 0.0
    %626 = vmatpush2.msra.mxu0 0.0
    %627 = vmatprep.subr.mxu0 0.0
    %628 = vmatpush2.msra.mxu0 0.0
    %629 = vmatprep.mubr.f32.mxu0 0.0
    %630 = vmatmul.mubr.f32.gmra.mxu0 %v485
    %v631 = vpop.f32.mrf.mxu0
    %v632 = vadd.f32 %v503, %v631
    %v633 = vpop.f32.mrf.mxu0
    %634 = vmatprep.mubr.f32.mxu0 0.0
    %635 = vmatmul.mubr.f32.gmra.mxu0 %v486
    %v636 = vpop.f32.mrf.mxu0
    %v637 = vadd.f32 %v507, %v636
    %v638 = vpop.f32.mrf.mxu0
    %639 = vmatprep.mubr.f32.mxu0 0.0
    %640 = vmatmul.mubr.f32.gmra.mxu0 %v487
    %v641 = vpop.f32.mrf.mxu0
    %v642 = vadd.f32 %v511, %v641
    %v643 = vpop.f32.mrf.mxu0
    %644 = vmatprep.mubr.f32.mxu0 0.0
    %645 = vmatmul.mubr.f32.gmra.mxu0 %v488
    %v646 = vpop.f32.mrf.mxu0
    %v647 = vadd.f32 %v515, %v646
    %v648 = vpop.f32.mrf.mxu0
    %649 = vmatprep.mubr.f32.mxu0 0.0
    %650 = vmatmul.mubr.f32.gmra.mxu0 %v489
    %v651 = vpop.f32.mrf.mxu0
    %v652 = vadd.f32 %v519, %v651
    %v653 = vpop.f32.mrf.mxu0
    %654 = vmatprep.mubr.f32.mxu0 0.0
    %655 = vmatmul.mubr.f32.gmra.mxu0 %v490
    %v656 = vpop.f32.mrf.mxu0
    %v657 = vadd.f32 %v523, %v656
    %v658 = vpop.f32.mrf.mxu0
    %659 = vmatprep.mubr.f32.mxu0 0.0
    %660 = vmatmul.mubr.f32.gmra.mxu0 %v491
    %v661 = vpop.f32.mrf.mxu0
    %v662 = vadd.f32 %v527, %v661
    %v663 = vpop.f32.mrf.mxu0
    %664 = vmatprep.mubr.f32.mxu0 0.0
    %665 = vmatmul.mubr.f32.gmra.mxu0 %v492
    %v666 = vpop.f32.mrf.mxu0
    %v667 = vadd.f32 %v531, %v666
    %v668 = vpop.f32.mrf.mxu0
    %669 = vmatprep.mubr.f32.mxu0 0.0
    %670 = vmatmul.mubr.f32.gmra.mxu0 %v493
    %v671 = vpop.f32.mrf.mxu0
    %v672 = vadd.f32 %v535, %v671
    %v673 = vpop.f32.mrf.mxu0
    %674 = vmatprep.mubr.f32.mxu0 0.0
    %675 = vmatmul.mubr.f32.gmra.mxu0 %v494
    %v676 = vpop.f32.mrf.mxu0
    %v677 = vadd.f32 %v539, %v676
    %v678 = vpop.f32.mrf.mxu0
    %679 = vmatprep.mubr.f32.mxu0 0.0
    %680 = vmatmul.mubr.f32.gmra.mxu0 %v495
    %v681 = vpop.f32.mrf.mxu0
    %v682 = vadd.f32 %v543, %v681
    %v683 = vpop.f32.mrf.mxu0
    %684 = vmatprep.mubr.f32.mxu0 0.0
    %685 = vmatmul.mubr.f32.gmra.mxu0 %v496
    %v686 = vpop.f32.mrf.mxu0
    %v687 = vadd.f32 %v547, %v686
    %v688 = vpop.f32.mrf.mxu0
    %689 = vmatprep.mubr.f32.mxu0 0.0
    %690 = vmatmul.mubr.f32.gmra.mxu0 %v497
    %v691 = vpop.f32.mrf.mxu0
    %v692 = vadd.f32 %v551, %v691
    %v693 = vpop.f32.mrf.mxu0
    %694 = vmatprep.mubr.f32.mxu0 0.0
    %695 = vmatmul.mubr.f32.gmra.mxu0 %v498
    %v696 = vpop.f32.mrf.mxu0
    %v697 = vadd.f32 %v555, %v696
    %v698 = vpop.f32.mrf.mxu0
    %699 = vmatprep.mubr.f32.mxu0 0.0
    %700 = vmatmul.mubr.f32.gmra.mxu0 %v499
    %v701 = vpop.f32.mrf.mxu0
    %v702 = vadd.f32 %v559, %v701
    %v703 = vpop.f32.mrf.mxu0
    %704 = vmatprep.mubr.f32.mxu0 0.0
    %705 = vmatmul.mubr.f32.gmra.mxu0 %v500
    %v706 = vpop.f32.mrf.mxu0
    %v707 = vadd.f32 %v563, %v706
    %v708 = vpop.f32.mrf.mxu0
    %709 = vdwg.mxu0
    %v710 = vmax.f32 %v632, 0.0
    %v711 = vmax.f32 %v637, 0.0
    %v712 = vmax.f32 %v642, 0.0
    %v713 = vmax.f32 %v647, 0.0
    %v714 = vmax.f32 %v652, 0.0
    %v715 = vmax.f32 %v657, 0.0
    %v716 = vmax.f32 %v662, 0.0
    %v717 = vmax.f32 %v667, 0.0
    %v718 = vmax.f32 %v672, 0.0
    %v719 = vmax.f32 %v677, 0.0
    %v720 = vmax.f32 %v682, 0.0
    %v721 = vmax.f32 %v687, 0.0
    %v722 = vmax.f32 %v692, 0.0
    %v723 = vmax.f32 %v697, 0.0
    %v724 = vmax.f32 %v702, 0.0
    %v725 = vmax.f32 %v707, 0.0
    %s726 = scalar_lea.vmem [#allocation2], 256
    %v727 = vld [vmem:[%s726] sm:$0xff]
    %v728 = vld [vmem:[%s726 + $0x8] sm:$0xff]
    %v729 = vld [vmem:[%s726 + $0x10] sm:$0xff]
    %v730 = vld [vmem:[%s726 + $0x18] sm:$0xff]
    %v731 = vld [vmem:[%s726 + $0x20] sm:$0xff]
    %v732 = vld [vmem:[%s726 + $0x28] sm:$0xff]
    %v733 = vld [vmem:[%s726 + $0x30] sm:$0xff]
    %v734 = vld [vmem:[%s726 + $0x38] sm:$0xff]
    %v735 = vld [vmem:[%s726 + $0x40] sm:$0xff]
    %v736 = vld [vmem:[%s726 + $0x48] sm:$0xff]
    %v737 = vld [vmem:[%s726 + $0x50] sm:$0xff]
    %v738 = vld [vmem:[%s726 + $0x58] sm:$0xff]
    %v739 = vld [vmem:[%s726 + $0x60] sm:$0xff]
    %v740 = vld [vmem:[%s726 + $0x68] sm:$0xff]
    %v741 = vld [vmem:[%s726 + $0x70] sm:$0xff]
    %v742 = vld [vmem:[%s726 + $0x78] sm:$0xff]
    %743 = vset.pattern.permute.xlu0 3
    %744 = vperm.xlu0 %743, %v29
    %v745 = vpop.permute.xlu0 %744
    %747 = vset.pattern.permute.xlu0 3
    %748 = vperm.xlu0 %747, %v30
    %v749 = vpop.permute.xlu0 %748
    %750 = vset.pattern.permute.xlu0 3
    %751 = vperm.xlu0 %750, %v31
    %v752 = vpop.permute.xlu0 %751
    %753 = vset.pattern.permute.xlu0 3
    %754 = vperm.xlu0 %753, %v32
    %v755 = vpop.permute.xlu0 %754
    %756 = vset.pattern.permute.xlu0 3
    %757 = vperm.xlu0 %756, %v33
    %v758 = vpop.permute.xlu0 %757
    %759 = vset.pattern.permute.xlu0 3
    %760 = vperm.xlu0 %759, %v34
    %v761 = vpop.permute.xlu0 %760
    %762 = vset.pattern.permute.xlu0 3
    %763 = vperm.xlu0 %762, %v35
    %v764 = vpop.permute.xlu0 %763
    %765 = vset.pattern.permute.xlu0 3
    %766 = vperm.xlu0 %765, %v36
    %v767 = vpop.permute.xlu0 %766
    %768 = vset.pattern.permute.xlu0 3
    %769 = vperm.xlu0 %768, %v37
    %v770 = vpop.permute.xlu0 %769
    %771 = vset.pattern.permute.xlu0 3
    %772 = vperm.xlu0 %771, %v38
    %v773 = vpop.permute.xlu0 %772
    %774 = vset.pattern.permute.xlu0 3
    %775 = vperm.xlu0 %774, %v39
    %v776 = vpop.permute.xlu0 %775
    %777 = vset.pattern.permute.xlu0 3
    %778 = vperm.xlu0 %777, %v40
    %v779 = vpop.permute.xlu0 %778
    %780 = vset.pattern.permute.xlu0 3
    %781 = vperm.xlu0 %780, %v41
    %v782 = vpop.permute.xlu0 %781
    %783 = vset.pattern.permute.xlu0 3
    %784 = vperm.xlu0 %783, %v42
    %v785 = vpop.permute.xlu0 %784
    %786 = vset.pattern.permute.xlu0 3
    %787 = vperm.xlu0 %786, %v43
    %v788 = vpop.permute.xlu0 %787
    %789 = vset.pattern.permute.xlu0 3
    %790 = vperm.xlu0 %789, %v44
    %v791 = vpop.permute.xlu0 %790
    %792 = vmatprep.subr.mxu0 0.0
    %793 = vmatpush1.msra.mxu0 %v725
    %794 = vmatprep.subr.mxu0 0.0
    %795 = vmatpush1.msra.mxu0 %v724
    %796 = vmatprep.subr.mxu0 0.0
    %797 = vmatpush1.msra.mxu0 %v723
    %798 = vmatprep.subr.mxu0 0.0
    %799 = vmatpush1.msra.mxu0 %v722
    %800 = vmatprep.subr.mxu0 0.0
    %801 = vmatpush1.msra.mxu0 %v721
    %802 = vmatprep.subr.mxu0 0.0
    %803 = vmatpush1.msra.mxu0 %v720
    %804 = vmatprep.subr.mxu0 0.0
    %805 = vmatpush1.msra.mxu0 %v719
    %806 = vmatprep.subr.mxu0 0.0
    %807 = vmatpush1.msra.mxu0 %v718
    %808 = vmatprep.subr.mxu0 0.0
    %809 = vmatpush1.msra.mxu0 %v717
    %810 = vmatprep.subr.mxu0 0.0
    %811 = vmatpush1.msra.mxu0 %v716
    %812 = vmatprep.subr.mxu0 0.0
    %813 = vmatpush1.msra.mxu0 %v715
    %814 = vmatprep.subr.mxu0 0.0
    %815 = vmatpush1.msra.mxu0 %v714
    %816 = vmatprep.subr.mxu0 0.0
    %817 = vmatpush1.msra.mxu0 %v713
    %818 = vmatprep.subr.mxu0 0.0
    %819 = vmatpush1.msra.mxu0 %v712
    %820 = vmatprep.subr.mxu0 0.0
    %821 = vmatpush1.msra.mxu0 %v711
    %822 = vmatprep.subr.mxu0 0.0
    %823 = vmatpush1.msra.mxu0 %v710
    %824 = vmatprep.subr.mxu0 0.0
    %825 = vmatpush2.msra.mxu0 0.0
    %826 = vmatprep.subr.mxu0 0.0
    %827 = vmatpush2.msra.mxu0 0.0
    %828 = vmatprep.subr.mxu0 0.0
    %829 = vmatpush2.msra.mxu0 0.0
    %830 = vmatprep.subr.mxu0 0.0
    %831 = vmatpush2.msra.mxu0 0.0
    %832 = vmatprep.subr.mxu0 0.0
    %833 = vmatpush2.msra.mxu0 0.0
    %834 = vmatprep.subr.mxu0 0.0
    %835 = vmatpush2.msra.mxu0 0.0
    %836 = vmatprep.subr.mxu0 0.0
    %837 = vmatpush2.msra.mxu0 0.0
    %838 = vmatprep.subr.mxu0 0.0
    %839 = vmatpush2.msra.mxu0 0.0
    %840 = vmatprep.subr.mxu0 0.0
    %841 = vmatpush2.msra.mxu0 0.0
    %842 = vmatprep.subr.mxu0 0.0
    %843 = vmatpush2.msra.mxu0 0.0
    %844 = vmatprep.subr.mxu0 0.0
    %845 = vmatpush2.msra.mxu0 0.0
    %846 = vmatprep.subr.mxu0 0.0
    %847 = vmatpush2.msra.mxu0 0.0
    %848 = vmatprep.subr.mxu0 0.0
    %849 = vmatpush2.msra.mxu0 0.0
    %850 = vmatprep.subr.mxu0 0.0
    %851 = vmatpush2.msra.mxu0 0.0
    %852 = vmatprep.subr.mxu0 0.0
    %853 = vmatpush2.msra.mxu0 0.0
    %854 = vmatprep.subr.mxu0 0.0
    %855 = vmatpush2.msra.mxu0 0.0
    %856 = vmatprep.mubr.f32.mxu0 0.0
    %857 = vmatmul.mubr.f32.gmra.mxu0 %v727
    %v858 = vpop.f32.mrf.mxu0
    %v859 = vadd.f32 %v745, %v858
    %v860 = vpop.f32.mrf.mxu0
    %861 = vmatprep.mubr.f32.mxu0 0.0
    %862 = vmatmul.mubr.f32.gmra.mxu0 %v728
    %v863 = vpop.f32.mrf.mxu0
    %v864 = vpop.f32.mrf.mxu0
    %865 = vmatprep.mubr.f32.mxu0 0.0
    %866 = vmatmul.mubr.f32.gmra.mxu0 %v729
    %v867 = vpop.f32.mrf.mxu0
    %v868 = vpop.f32.mrf.mxu0
    %869 = vmatprep.mubr.f32.mxu0 0.0
    %870 = vmatmul.mubr.f32.gmra.mxu0 %v730
    %v871 = vpop.f32.mrf.mxu0
    %v872 = vpop.f32.mrf.mxu0
    %873 = vmatprep.mubr.f32.mxu0 0.0
    %874 = vmatmul.mubr.f32.gmra.mxu0 %v731
    %v875 = vpop.f32.mrf.mxu0
    %v876 = vpop.f32.mrf.mxu0
    %877 = vmatprep.mubr.f32.mxu0 0.0
    %878 = vmatmul.mubr.f32.gmra.mxu0 %v732
    %v879 = vpop.f32.mrf.mxu0
    %v880 = vpop.f32.mrf.mxu0
    %881 = vmatprep.mubr.f32.mxu0 0.0
    %882 = vmatmul.mubr.f32.gmra.mxu0 %v733
    %v883 = vpop.f32.mrf.mxu0
    %v884 = vpop.f32.mrf.mxu0
    %885 = vmatprep.mubr.f32.mxu0 0.0
    %886 = vmatmul.mubr.f32.gmra.mxu0 %v734
    %v887 = vpop.f32.mrf.mxu0
    %v888 = vpop.f32.mrf.mxu0
    %889 = vmatprep.mubr.f32.mxu0 0.0
    %890 = vmatmul.mubr.f32.gmra.mxu0 %v735
    %v891 = vpop.f32.mrf.mxu0
    %v892 = vpop.f32.mrf.mxu0
    %893 = vmatprep.mubr.f32.mxu0 0.0
    %894 = vmatmul.mubr.f32.gmra.mxu0 %v736
    %v895 = vpop.f32.mrf.mxu0
    %v896 = vpop.f32.mrf.mxu0
    %897 = vmatprep.mubr.f32.mxu0 0.0
    %898 = vmatmul.mubr.f32.gmra.mxu0 %v737
    %v899 = vpop.f32.mrf.mxu0
    %v900 = vpop.f32.mrf.mxu0
    %901 = vmatprep.mubr.f32.mxu0 0.0
    %902 = vmatmul.mubr.f32.gmra.mxu0 %v738
    %v903 = vpop.f32.mrf.mxu0
    %v904 = vpop.f32.mrf.mxu0
    %905 = vmatprep.mubr.f32.mxu0 0.0
    %906 = vmatmul.mubr.f32.gmra.mxu0 %v739
    %v907 = vpop.f32.mrf.mxu0
    %v908 = vpop.f32.mrf.mxu0
    %909 = vmatprep.mubr.f32.mxu0 0.0
    %910 = vmatmul.mubr.f32.gmra.mxu0 %v740
    %v911 = vpop.f32.mrf.mxu0
    %v912 = vpop.f32.mrf.mxu0
    %913 = vmatprep.mubr.f32.mxu0 0.0
    %914 = vmatmul.mubr.f32.gmra.mxu0 %v741
    %v915 = vpop.f32.mrf.mxu0
    %v916 = vpop.f32.mrf.mxu0
    %917 = vmatprep.mubr.f32.mxu0 0.0
    %918 = vmatmul.mubr.f32.gmra.mxu0 %v742
    %v919 = vpop.f32.mrf.mxu0
    %v920 = vpop.f32.mrf.mxu0
    %921 = vdwg.mxu0
    %vm922 = vcmask 80896
    %923 = vst.msk [vmem:[%s3] sm:$0xff] %vm922, %v859
    // Predicated region
    $region18: #{sirnet_forward.1} parent=1 // pred_check
      _
    $region19: #{sirnet_forward.1} parent=1 // pred_check_branch
      %925 = sbr.rel (0) target = $region21
    $region20: #{sirnet_forward.1} parent=1 // pred_region
      _
    $region21: #{sirnet_forward.1} parent=1 // pred_fallthru
      _
    // Predicated region
    $region22: #{sirnet_forward.1} parent=1 // pred_check
      _
    $region23: #{sirnet_forward.1} parent=1 // pred_check_branch
      %927 = sbr.rel (0) target = $region25
    $region24: #{sirnet_forward.1} parent=1 // pred_region
      _
    $region25: #{sirnet_forward.1} parent=1 // pred_fallthru
      _
    %928 = vsyncpa [#allocation3], 1

</llo_original>
